<compile_context>
chip_gen: v7x
topology: tpu7x:2x2x1
jax: 0.10.0
libtpu: 0.0.40
codegen_flags: <defaults>
</compile_context>

<pallas_src>
from functools import partial

import jax
import jax.numpy as jnp
from jax.experimental import pallas as pl
from jax.experimental.pallas import tpu as pltpu

NODE_DIM = 128     # node_dim
AUX_DIM = 128      # aux_dim
SCALAR_DIM = 1
IN_DIM = NODE_DIM + 2 * AUX_DIM   # 384
H1, H2 = 128, 64
LN_EPS = 1e-5      # nn.LayerNorm default eps


def _round_up(x, m):
    return ((x + m - 1) // m) * m


def mlp_kernel(src_ref, ptd_ref, arr_ref, stats_ref,
               up_ref, vp_ref, betap_ref,
               ua_ref, va_ref, betaa_ref,
               w1_ref, b1_ref, w2_ref, b2_ref, w3t_ref, b3_ref,
               out_ref):
    ptd = ptd_ref[...]            # (T, 1) f32
    arr = arr_ref[...]            # (T, 1) f32, already globally normalized
    s = stats_ref[...]            # (1, 8) f32: [var_w, 2cov, var_b+eps] x 2 proj

    # Folded LayerNorm of the scalar projections: no cross-lane reductions,
    # just per-row invstd on the (T, 1) column + two broadcast FMAs per proj.
    inv_p = jax.lax.rsqrt(ptd * ptd * s[:, 0:1] + ptd * s[:, 1:2] + s[:, 2:3])
    inv_a = jax.lax.rsqrt(arr * arr * s[:, 3:4] + arr * s[:, 4:5] + s[:, 5:6])

    # Linear(1->128) + LayerNorm + ReLU (+ identity dropout, eval mode).
    ptd_emb = jnp.maximum((ptd * up_ref[...] + vp_ref[...]) * inv_p + betap_ref[...], 0.0)
    arr_emb = jnp.maximum((arr * ua_ref[...] + va_ref[...]) * inv_a + betaa_ref[...], 0.0)

    # fc_1 over concat([src, ptd_emb, arr_emb]) as split-K matmuls against
    # static row slices of W1.  The two embeddings are packed into one K=256
    # operand (single MXU pass on v6e/v7x; two native K=128 passes on v5e).
    emb = jnp.concatenate([ptd_emb, arr_emb], axis=-1).astype(jnp.bfloat16)   # (T, 256)
    h = (jnp.dot(src_ref[...].astype(jnp.bfloat16), w1_ref[0:NODE_DIM, :],
                 preferred_element_type=jnp.float32)
         + jnp.dot(emb, w1_ref[NODE_DIM:IN_DIM, :],
                   preferred_element_type=jnp.float32)
         + b1_ref[...])
    h = jnp.maximum(h, 0.0)                                 # ReLU (+ identity dropout)

    h2 = jnp.maximum(
        jnp.dot(h.astype(jnp.bfloat16), w2_ref[...],
                preferred_element_type=jnp.float32) + b2_ref[...], 0.0)

    # fc_3 (64 -> 1) as VPU multiply + cross-lane reduce (avoids an N=1 MXU pass).
    out_ref[...] = jnp.sum(h2 * w3t_ref[...], axis=-1, keepdims=True) + b3_ref[...]


def _fold_ln(w, b, gamma):
    """Precompute the constants of LN(p*w + b)*gamma for a per-row scalar p."""
    w = w.astype(jnp.float32)
    b = b.astype(jnp.float32)
    gamma = gamma.astype(jnp.float32)
    mu_w = jnp.mean(w)
    mu_b = jnp.mean(b)
    wc = w - mu_w
    bc = b - mu_b
    u = wc * gamma                          # (1, D)
    v = bc * gamma                          # (1, D)
    var_w = jnp.mean(wc * wc)
    cov2 = 2.0 * jnp.mean(wc * bc)
    var_b_eps = jnp.mean(bc * bc) + LN_EPS
    return u, v, var_w, cov2, var_b_eps


@partial(jax.jit, static_argnames=("tile_b",))
def mlp_forward(params, src_feat, ptd, arrival, *, tile_b=2048):
    if ptd.ndim == 1:
        ptd = ptd[:, None]
    if arrival.ndim == 1:
        arrival = arrival[:, None]
    B = src_feat.shape[0]

    ptd = ptd.astype(jnp.float32)
    arr = arrival.astype(jnp.float32)

    # ---- arrival global normalization (hoisted; must span the full batch) ----
    n = arr.size
    mu = jnp.mean(arr)
    std = jnp.sqrt(jnp.sum((arr - mu) ** 2) / (n - 1))   # torch.std(): ddof=1 (NaN for B==1, like torch)
    arr_n = (arr - mu) / (std + 1e-6)

    # ---- folded-LayerNorm constants (parameter-sized, negligible) ----
    u_p, v_p, sw_p, c_p, sb_p = _fold_ln(params["wp"], params["bp"], params["gp"])
    u_a, v_a, sw_a, c_a, sb_a = _fold_ln(params["wa"], params["ba"], params["ga"])
    zero = jnp.zeros((), jnp.float32)
    lnstats = jnp.stack([sw_p, c_p, sb_p, sw_a, c_a, sb_a, zero, zero]).reshape(1, 8)

    # ---- tile selection ----
    # big tiles amortize the ~0.35us per-step cost; >=2 tiles for medium/large
    # batches so both v7x TensorCores get work; never (much) bigger than the
    # batch; multiple of 8 (f32 sublane tile).  Ragged tail handled by Pallas
    # partial-block masking (no padded copy).
    tb = min(tile_b, _round_up(pl.cdiv(B, 2), 256), _round_up(B, 8))
    tb = max(_round_up(tb, 8), 8)
    grid = (pl.cdiv(B, tb),)

    row = lambda i: (i, 0)        # batch-tiled operands
    const = lambda i: (0, 0)      # VMEM-resident params (no re-DMA across steps)

    in_specs = [
        pl.BlockSpec((tb, NODE_DIM), row),     # src_feat (f32, cast in-kernel)
        pl.BlockSpec((tb, 1), row),            # ptd
        pl.BlockSpec((tb, 1), row),            # arrival (normalized)
        pl.BlockSpec((1, 8), const),           # folded-LN scalar stats
        pl.BlockSpec((1, NODE_DIM), const),    # u_p
        pl.BlockSpec((1, NODE_DIM), const),    # v_p
        pl.BlockSpec((1, NODE_DIM), const),    # beta_p
        pl.BlockSpec((1, NODE_DIM), const),    # u_a
        pl.BlockSpec((1, NODE_DIM), const),    # v_a
        pl.BlockSpec((1, NODE_DIM), const),    # beta_a
        pl.BlockSpec((IN_DIM, H1), const),     # w1 (bf16)
        pl.BlockSpec((1, H1), const),          # b1
        pl.BlockSpec((H1, H2), const),         # w2 (bf16)
        pl.BlockSpec((1, H2), const),          # b2
        pl.BlockSpec((1, H2), const),          # w3^T (f32)
        pl.BlockSpec((1, 1), const),           # b3
    ]

    out = pl.pallas_call(
        mlp_kernel,
        out_shape=jax.ShapeDtypeStruct((B, 1), jnp.float32),
        grid=grid,
        in_specs=in_specs,
        out_specs=pl.BlockSpec((tb, 1), row),
        compiler_params=pltpu.CompilerParams(
            dimension_semantics=("parallel",),        # v7x: 2 TCs split the batch
            vmem_limit_bytes=32 * 1024 * 1024,        # plenty at tb<=4096, safe on v7x
        ),
    )(src_feat, ptd, arr_n, lnstats,
      u_p, v_p, params["betap"], u_a, v_a, params["betaa"],
      params["w1"].astype(jnp.bfloat16), params["b1"],
      params["w2"].astype(jnp.bfloat16), params["b2"],
      params["w3"].T.astype(jnp.float32), params["b3"])

    return out[:, 0]                                  # matches .squeeze(1) -> (B,)


def init_params(key):
    ks = jax.random.split(key, 10)

    def kaiming(k, fan_in, fan_out):
        # kaiming_normal_ (fan_in, gain=sqrt(2)); stored as (in, out)
        std = (2.0 / fan_in) ** 0.5
        return jax.random.normal(k, (fan_in, fan_out), jnp.float32) * std

    def lin_default(k, fan_in, fan_out):
        bound = 1.0 / (fan_in ** 0.5)
        return jax.random.uniform(k, (fan_in, fan_out), jnp.float32, -bound, bound)

    return {
        # ptd_proj: Linear(1, 128) + LayerNorm(128)
        "wp": lin_default(ks[0], SCALAR_DIM, NODE_DIM),                        # (1, 128)
        "bp": jax.random.uniform(ks[1], (1, NODE_DIM), jnp.float32, -1.0, 1.0),
        "gp": jnp.ones((1, NODE_DIM), jnp.float32),
        "betap": jnp.zeros((1, NODE_DIM), jnp.float32),
        # arrival_proj
        "wa": lin_default(ks[2], SCALAR_DIM, NODE_DIM),                        # (1, 128)
        "ba": jax.random.uniform(ks[3], (1, NODE_DIM), jnp.float32, -1.0, 1.0),
        "ga": jnp.ones((1, NODE_DIM), jnp.float32),
        "betaa": jnp.zeros((1, NODE_DIM), jnp.float32),
        # fc_1 / fc_2 / fc_3
        "w1": kaiming(ks[4], IN_DIM, H1),                                      # (384, 128)
        "b1": jax.random.uniform(ks[5], (1, H1), jnp.float32, -0.051, 0.051),
        "w2": kaiming(ks[6], H1, H2),                                          # (128, 64)
        "b2": jax.random.uniform(ks[7], (1, H2), jnp.float32, -0.088, 0.088),
        "w3": kaiming(ks[8], H2, 1),                                           # (64, 1)
        "b3": jax.random.uniform(ks[9], (1, 1), jnp.float32, -0.125, 0.125),
    }


def reference_forward(params, src_feat, ptd, arrival):
    """Plain-JAX mirror of the PyTorch forward (eval mode), using the same
    mixed precision as the kernel (bf16 MXU operands, f32 accumulation)."""
    ptd = ptd[:, None] if ptd.ndim == 1 else ptd
    arrival = arrival[:, None] if arrival.ndim == 1 else arrival

    def ln(x, g, b):
        m = x.mean(-1, keepdims=True)
        v = ((x - m) ** 2).mean(-1, keepdims=True)
        return (x - m) * jax.lax.rsqrt(v + LN_EPS) * g + b

    def bdot(a, w):
        return jnp.dot(a.astype(jnp.bfloat16), w.astype(jnp.bfloat16),
                       preferred_element_type=jnp.float32)

    ptd_e = jax.nn.relu(ln(ptd * params["wp"] + params["bp"],
                           params["gp"], params["betap"]))
    n = arrival.size
    mu = arrival.mean()
    std = jnp.sqrt(((arrival - mu) ** 2).sum() / (n - 1))
    arr_n = (arrival - mu) / (std + 1e-6)
    arr_e = jax.nn.relu(ln(arr_n * params["wa"] + params["ba"],
                           params["ga"], params["betaa"]))
    x = jnp.concatenate([src_feat, ptd_e, arr_e], axis=1)
    x = jax.nn.relu(bdot(x, params["w1"]) + params["b1"])
    x = jax.nn.relu(bdot(x, params["w2"]) + params["b2"])
    return (x * params["w3"].T).sum(-1) + params["b3"][0, 0]


if __name__ == "__main__":
    key = jax.random.PRNGKey(0)
    kp, kx, k1, k2 = jax.random.split(key, 4)
    params = init_params(kp)

    # --- small test, matches the module's natural call (B=8) ---
    B = 8
    src_feat = jax.random.normal(kx, (B, NODE_DIM), jnp.float32)   # (8, 128)
    ptd = jax.random.normal(k1, (B,), jnp.float32)                 # (8,)
    arrival = jax.random.normal(k2, (B,), jnp.float32)             # (8,)

    out = jax.block_until_ready(mlp_forward(params, src_feat, ptd, arrival))
    ref = reference_forward(params, src_feat, ptd, arrival)
    assert out.shape == (B,)
    assert jnp.allclose(out, ref, atol=3e-3, rtol=3e-3), (out, ref)

    # --- multi-tile path: grid=2 with a ragged trailing block (256 + 44 rows) ---
    B2 = 300
    k3, k4, k5 = jax.random.split(k2, 3)
    src2 = jax.random.normal(k3, (B2, NODE_DIM), jnp.float32)
    ptd2 = jax.random.normal(k4, (B2,), jnp.float32)
    arr2 = jax.random.normal(k5, (B2,), jnp.float32)

    out2 = jax.block_until_ready(mlp_forward(params, src2, ptd2, arr2))
    ref2 = reference_forward(params, src2, ptd2, arr2)
    assert out2.shape == (B2,)
    assert jnp.allclose(out2, ref2, atol=3e-3, rtol=3e-3), (out2, ref2)

    print("KERNEL_OK")
</pallas_src>

<mosaic_0001>
module attributes {stable_mosaic.version = 11 : i64} {
  func.func @mlp_kernel(%arg0: i32, %arg1: memref<8x128xf32, #tpu.memory_space<vmem>>, %arg2: memref<8x1xf32, #tpu.memory_space<vmem>>, %arg3: memref<8x1xf32, #tpu.memory_space<vmem>>, %arg4: memref<1x8xf32, #tpu.memory_space<vmem>>, %arg5: memref<1x128xf32, #tpu.memory_space<vmem>>, %arg6: memref<1x128xf32, #tpu.memory_space<vmem>>, %arg7: memref<1x128xf32, #tpu.memory_space<vmem>>, %arg8: memref<1x128xf32, #tpu.memory_space<vmem>>, %arg9: memref<1x128xf32, #tpu.memory_space<vmem>>, %arg10: memref<1x128xf32, #tpu.memory_space<vmem>>, %arg11: memref<384x128xbf16, #tpu.memory_space<vmem>>, %arg12: memref<1x128xf32, #tpu.memory_space<vmem>>, %arg13: memref<128x64xbf16, #tpu.memory_space<vmem>>, %arg14: memref<1x64xf32, #tpu.memory_space<vmem>>, %arg15: memref<1x64xf32, #tpu.memory_space<vmem>>, %arg16: memref<1x1xf32, #tpu.memory_space<vmem>>, %arg17: memref<8x1xf32, #tpu.memory_space<vmem>>) attributes {dimension_semantics = [#tpu.dimension_semantics<parallel>], iteration_bounds = array<i64: 1>, scalar_prefetch = 0 : i64, scratch_operands = 0 : i64, tpu.core_type = #tpu.core_type<tc>, window_params = [{transform_indices = @transform_0, window_bounds = array<i64: 8, 128>}, {transform_indices = @transform_1, window_bounds = array<i64: 8, 1>}, {transform_indices = @transform_2, window_bounds = array<i64: 8, 1>}, {pipeline_mode = #tpu.pipeline_mode<synchronous>, transform_indices = @transform_3, window_bounds = array<i64: 1, 8>}, {pipeline_mode = #tpu.pipeline_mode<synchronous>, transform_indices = @transform_4, window_bounds = array<i64: 1, 128>}, {pipeline_mode = #tpu.pipeline_mode<synchronous>, transform_indices = @transform_5, window_bounds = array<i64: 1, 128>}, {pipeline_mode = #tpu.pipeline_mode<synchronous>, transform_indices = @transform_6, window_bounds = array<i64: 1, 128>}, {pipeline_mode = #tpu.pipeline_mode<synchronous>, transform_indices = @transform_7, window_bounds = array<i64: 1, 128>}, {pipeline_mode = #tpu.pipeline_mode<synchronous>, transform_indices = @transform_8, window_bounds = array<i64: 1, 128>}, {pipeline_mode = #tpu.pipeline_mode<synchronous>, transform_indices = @transform_9, window_bounds = array<i64: 1, 128>}, {pipeline_mode = #tpu.pipeline_mode<synchronous>, transform_indices = @transform_10, window_bounds = array<i64: 384, 128>}, {pipeline_mode = #tpu.pipeline_mode<synchronous>, transform_indices = @transform_11, window_bounds = array<i64: 1, 128>}, {pipeline_mode = #tpu.pipeline_mode<synchronous>, transform_indices = @transform_12, window_bounds = array<i64: 128, 64>}, {pipeline_mode = #tpu.pipeline_mode<synchronous>, transform_indices = @transform_13, window_bounds = array<i64: 1, 64>}, {pipeline_mode = #tpu.pipeline_mode<synchronous>, transform_indices = @transform_14, window_bounds = array<i64: 1, 64>}, {pipeline_mode = #tpu.pipeline_mode<synchronous>, transform_indices = @transform_15, window_bounds = array<i64: 1, 1>}, {transform_indices = @transform_16, window_bounds = array<i64: 8, 1>}]} {
    %c0 = arith.constant 0 : index
    %c0_0 = arith.constant 0 : index
    %0 = vector.load %arg2[%c0, %c0_0] : memref<8x1xf32, #tpu.memory_space<vmem>>, vector<8x1xf32>
    %c0_1 = arith.constant 0 : index
    %c0_2 = arith.constant 0 : index
    %1 = vector.load %arg3[%c0_1, %c0_2] : memref<8x1xf32, #tpu.memory_space<vmem>>, vector<8x1xf32>
    %c0_3 = arith.constant 0 : index
    %c0_4 = arith.constant 0 : index
    %2 = vector.load %arg4[%c0_3, %c0_4] : memref<1x8xf32, #tpu.memory_space<vmem>>, vector<1x8xf32>
    %3 = arith.mulf %0, %0 : vector<8x1xf32>
    %4 = vector.extract_strided_slice %2 {offsets = [0, 0], sizes = [1, 1], strides = [1, 1]} : vector<1x8xf32> to vector<1x1xf32>
    %5 = vector.broadcast %4 : vector<1x1xf32> to vector<8x1xf32>
    %6 = arith.mulf %3, %5 : vector<8x1xf32>
    %7 = vector.extract_strided_slice %2 {offsets = [0, 1], sizes = [1, 1], strides = [1, 1]} : vector<1x8xf32> to vector<1x1xf32>
    %8 = vector.broadcast %7 : vector<1x1xf32> to vector<8x1xf32>
    %9 = arith.mulf %0, %8 : vector<8x1xf32>
    %10 = arith.addf %6, %9 : vector<8x1xf32>
    %11 = vector.extract_strided_slice %2 {offsets = [0, 2], sizes = [1, 1], strides = [1, 1]} : vector<1x8xf32> to vector<1x1xf32>
    %12 = vector.broadcast %11 : vector<1x1xf32> to vector<8x1xf32>
    %13 = arith.addf %10, %12 : vector<8x1xf32>
    %14 = math.rsqrt %13 : vector<8x1xf32>
    %15 = arith.mulf %1, %1 : vector<8x1xf32>
    %16 = vector.extract_strided_slice %2 {offsets = [0, 3], sizes = [1, 1], strides = [1, 1]} : vector<1x8xf32> to vector<1x1xf32>
    %17 = vector.broadcast %16 : vector<1x1xf32> to vector<8x1xf32>
    %18 = arith.mulf %15, %17 : vector<8x1xf32>
    %19 = vector.extract_strided_slice %2 {offsets = [0, 4], sizes = [1, 1], strides = [1, 1]} : vector<1x8xf32> to vector<1x1xf32>
    %20 = vector.broadcast %19 : vector<1x1xf32> to vector<8x1xf32>
    %21 = arith.mulf %1, %20 : vector<8x1xf32>
    %22 = arith.addf %18, %21 : vector<8x1xf32>
    %23 = vector.extract_strided_slice %2 {offsets = [0, 5], sizes = [1, 1], strides = [1, 1]} : vector<1x8xf32> to vector<1x1xf32>
    %24 = vector.broadcast %23 : vector<1x1xf32> to vector<8x1xf32>
    %25 = arith.addf %22, %24 : vector<8x1xf32>
    %26 = math.rsqrt %25 : vector<8x1xf32>
    %c0_5 = arith.constant 0 : index
    %c0_6 = arith.constant 0 : index
    %27 = vector.load %arg5[%c0_5, %c0_6] : memref<1x128xf32, #tpu.memory_space<vmem>>, vector<1x128xf32>
    %28 = vector.broadcast %0 : vector<8x1xf32> to vector<8x128xf32>
    %29 = vector.broadcast %27 : vector<1x128xf32> to vector<8x128xf32>
    %30 = arith.mulf %28, %29 : vector<8x128xf32>
    %c0_7 = arith.constant 0 : index
    %c0_8 = arith.constant 0 : index
    %31 = vector.load %arg6[%c0_7, %c0_8] : memref<1x128xf32, #tpu.memory_space<vmem>>, vector<1x128xf32>
    %32 = vector.broadcast %31 : vector<1x128xf32> to vector<8x128xf32>
    %33 = arith.addf %30, %32 : vector<8x128xf32>
    %34 = vector.broadcast %14 : vector<8x1xf32> to vector<8x128xf32>
    %35 = arith.mulf %33, %34 : vector<8x128xf32>
    %c0_9 = arith.constant 0 : index
    %c0_10 = arith.constant 0 : index
    %36 = vector.load %arg7[%c0_9, %c0_10] : memref<1x128xf32, #tpu.memory_space<vmem>>, vector<1x128xf32>
    %37 = vector.broadcast %36 : vector<1x128xf32> to vector<8x128xf32>
    %38 = arith.addf %35, %37 : vector<8x128xf32>
    %cst = arith.constant 0.000000e+00 : f32
    %39 = vector.broadcast %cst : f32 to vector<8x128xf32>
    %40 = arith.maximumf %38, %39 : vector<8x128xf32>
    %c0_11 = arith.constant 0 : index
    %c0_12 = arith.constant 0 : index
    %41 = vector.load %arg8[%c0_11, %c0_12] : memref<1x128xf32, #tpu.memory_space<vmem>>, vector<1x128xf32>
    %42 = vector.broadcast %1 : vector<8x1xf32> to vector<8x128xf32>
    %43 = vector.broadcast %41 : vector<1x128xf32> to vector<8x128xf32>
    %44 = arith.mulf %42, %43 : vector<8x128xf32>
    %c0_13 = arith.constant 0 : index
    %c0_14 = arith.constant 0 : index
    %45 = vector.load %arg9[%c0_13, %c0_14] : memref<1x128xf32, #tpu.memory_space<vmem>>, vector<1x128xf32>
    %46 = vector.broadcast %45 : vector<1x128xf32> to vector<8x128xf32>
    %47 = arith.addf %44, %46 : vector<8x128xf32>
    %48 = vector.broadcast %26 : vector<8x1xf32> to vector<8x128xf32>
    %49 = arith.mulf %47, %48 : vector<8x128xf32>
    %c0_15 = arith.constant 0 : index
    %c0_16 = arith.constant 0 : index
    %50 = vector.load %arg10[%c0_15, %c0_16] : memref<1x128xf32, #tpu.memory_space<vmem>>, vector<1x128xf32>
    %51 = vector.broadcast %50 : vector<1x128xf32> to vector<8x128xf32>
    %52 = arith.addf %49, %51 : vector<8x128xf32>
    %cst_17 = arith.constant 0.000000e+00 : f32
    %53 = vector.broadcast %cst_17 : f32 to vector<8x128xf32>
    %54 = arith.maximumf %52, %53 : vector<8x128xf32>
    %55 = tpu.concatenate %40, %54 in 1 : vector<8x128xf32>, vector<8x128xf32> -> vector<8x256xf32>
    %56 = arith.truncf %55 : vector<8x256xf32> to vector<8x256xbf16>
    %c0_18 = arith.constant 0 : index
    %c0_19 = arith.constant 0 : index
    %57 = vector.load %arg1[%c0_18, %c0_19] : memref<8x128xf32, #tpu.memory_space<vmem>>, vector<8x128xf32>
    %58 = arith.truncf %57 : vector<8x128xf32> to vector<8x128xbf16>
    %c0_20 = arith.constant 0 : index
    %c0_21 = arith.constant 0 : index
    %59 = vector.load %arg11[%c0_20, %c0_21] : memref<384x128xbf16, #tpu.memory_space<vmem>>, vector<128x128xbf16>
    %cst_22 = arith.constant dense<0.000000e+00> : vector<8x128xf32>
    %60 = tpu.matmul %58, %59, %cst_22 {dimension_numbers = #tpu.dot_dimension_numbers<[1], [0], [0], [1], [0, 0, 1, 1], [], []>} : vector<8x128xbf16>, vector<128x128xbf16>, vector<8x128xf32> -> vector<8x128xf32>
    %c128 = arith.constant 128 : index
    %c0_23 = arith.constant 0 : index
    %61 = vector.load %arg11[%c128, %c0_23] : memref<384x128xbf16, #tpu.memory_space<vmem>>, vector<256x128xbf16>
    %cst_24 = arith.constant dense<0.000000e+00> : vector<8x128xf32>
    %62 = tpu.matmul %56, %61, %cst_24 {dimension_numbers = #tpu.dot_dimension_numbers<[1], [0], [0], [1], [0, 0, 1, 1], [], []>} : vector<8x256xbf16>, vector<256x128xbf16>, vector<8x128xf32> -> vector<8x128xf32>
    %63 = arith.addf %60, %62 : vector<8x128xf32>
    %c0_25 = arith.constant 0 : index
    %c0_26 = arith.constant 0 : index
    %64 = vector.load %arg12[%c0_25, %c0_26] : memref<1x128xf32, #tpu.memory_space<vmem>>, vector<1x128xf32>
    %65 = vector.broadcast %64 : vector<1x128xf32> to vector<8x128xf32>
    %66 = arith.addf %63, %65 : vector<8x128xf32>
    %cst_27 = arith.constant 0.000000e+00 : f32
    %67 = vector.broadcast %cst_27 : f32 to vector<8x128xf32>
    %68 = arith.maximumf %66, %67 : vector<8x128xf32>
    %69 = arith.truncf %68 : vector<8x128xf32> to vector<8x128xbf16>
    %c0_28 = arith.constant 0 : index
    %c0_29 = arith.constant 0 : index
    %70 = vector.load %arg13[%c0_28, %c0_29] : memref<128x64xbf16, #tpu.memory_space<vmem>>, vector<128x64xbf16>
    %cst_30 = arith.constant dense<0.000000e+00> : vector<8x64xf32>
    %71 = tpu.matmul %69, %70, %cst_30 {dimension_numbers = #tpu.dot_dimension_numbers<[1], [0], [0], [1], [0, 0, 1, 1], [], []>} : vector<8x128xbf16>, vector<128x64xbf16>, vector<8x64xf32> -> vector<8x64xf32>
    %c0_31 = arith.constant 0 : index
    %c0_32 = arith.constant 0 : index
    %72 = vector.load %arg14[%c0_31, %c0_32] : memref<1x64xf32, #tpu.memory_space<vmem>>, vector<1x64xf32>
    %73 = vector.broadcast %72 : vector<1x64xf32> to vector<8x64xf32>
    %74 = arith.addf %71, %73 : vector<8x64xf32>
    %cst_33 = arith.constant 0.000000e+00 : f32
    %75 = vector.broadcast %cst_33 : f32 to vector<8x64xf32>
    %76 = arith.maximumf %74, %75 : vector<8x64xf32>
    %c0_34 = arith.constant 0 : index
    %c0_35 = arith.constant 0 : index
    %77 = vector.load %arg15[%c0_34, %c0_35] : memref<1x64xf32, #tpu.memory_space<vmem>>, vector<1x64xf32>
    %78 = vector.broadcast %77 : vector<1x64xf32> to vector<8x64xf32>
    %79 = arith.mulf %76, %78 : vector<8x64xf32>
    %cst_36 = arith.constant dense<0.000000e+00> : vector<8xf32>
    %80 = vector.multi_reduction <add>, %79, %cst_36 [1] : vector<8x64xf32> to vector<8xf32>
    %81 = vector.shape_cast %80 : vector<8xf32> to vector<8x1xf32>
    %c0_37 = arith.constant 0 : index
    %c0_38 = arith.constant 0 : index
    %82 = vector.load %arg16[%c0_37, %c0_38] : memref<1x1xf32, #tpu.memory_space<vmem>>, vector<1x1xf32>
    %83 = vector.broadcast %82 : vector<1x1xf32> to vector<8x1xf32>
    %84 = arith.addf %81, %83 : vector<8x1xf32>
    %c0_39 = arith.constant 0 : index
    %c0_40 = arith.constant 0 : index
    %85 = vector.load %arg17[%c0_39, %c0_40] : memref<8x1xf32, #tpu.memory_space<vmem>>, vector<8x1xf32>
    tpu.vector_store %arg17[%c0_39, %c0_40], %84 {strides = array<i32>} : memref<8x1xf32, #tpu.memory_space<vmem>>, vector<8x1xf32>,
    return
  }
  func.func @transform_0(%arg0: i32) -> (i32, i32) {
    %c0_i32 = arith.constant 0 : i32
    %c0_i32_0 = arith.constant 0 : i32
    return %arg0, %c0_i32 : i32, i32
  }
  func.func @transform_1(%arg0: i32) -> (i32, i32) {
    %c0_i32 = arith.constant 0 : i32
    %c0_i32_0 = arith.constant 0 : i32
    return %arg0, %c0_i32 : i32, i32
  }
  func.func @transform_2(%arg0: i32) -> (i32, i32) {
    %c0_i32 = arith.constant 0 : i32
    %c0_i32_0 = arith.constant 0 : i32
    return %arg0, %c0_i32 : i32, i32
  }
  func.func @transform_3(%arg0: i32) -> (i32, i32) {
    %c0_i32 = arith.constant 0 : i32
    %c0_i32_0 = arith.constant 0 : i32
    %c0_i32_1 = arith.constant 0 : i32
    return %c0_i32, %c0_i32_0 : i32, i32
  }
  func.func @transform_4(%arg0: i32) -> (i32, i32) {
    %c0_i32 = arith.constant 0 : i32
    %c0_i32_0 = arith.constant 0 : i32
    %c0_i32_1 = arith.constant 0 : i32
    return %c0_i32, %c0_i32_0 : i32, i32
  }
  func.func @transform_5(%arg0: i32) -> (i32, i32) {
    %c0_i32 = arith.constant 0 : i32
    %c0_i32_0 = arith.constant 0 : i32
    %c0_i32_1 = arith.constant 0 : i32
    return %c0_i32, %c0_i32_0 : i32, i32
  }
  func.func @transform_6(%arg0: i32) -> (i32, i32) {
    %c0_i32 = arith.constant 0 : i32
    %c0_i32_0 = arith.constant 0 : i32
    %c0_i32_1 = arith.constant 0 : i32
    return %c0_i32, %c0_i32_0 : i32, i32
  }
  func.func @transform_7(%arg0: i32) -> (i32, i32) {
    %c0_i32 = arith.constant 0 : i32
    %c0_i32_0 = arith.constant 0 : i32
    %c0_i32_1 = arith.constant 0 : i32
    return %c0_i32, %c0_i32_0 : i32, i32
  }
  func.func @transform_8(%arg0: i32) -> (i32, i32) {
    %c0_i32 = arith.constant 0 : i32
    %c0_i32_0 = arith.constant 0 : i32
    %c0_i32_1 = arith.constant 0 : i32
    return %c0_i32, %c0_i32_0 : i32, i32
  }
  func.func @transform_9(%arg0: i32) -> (i32, i32) {
    %c0_i32 = arith.constant 0 : i32
    %c0_i32_0 = arith.constant 0 : i32
    %c0_i32_1 = arith.constant 0 : i32
    return %c0_i32, %c0_i32_0 : i32, i32
  }
  func.func @transform_10(%arg0: i32) -> (i32, i32) {
    %c0_i32 = arith.constant 0 : i32
    %c0_i32_0 = arith.constant 0 : i32
    %c0_i32_1 = arith.constant 0 : i32
    return %c0_i32, %c0_i32_0 : i32, i32
  }
  func.func @transform_11(%arg0: i32) -> (i32, i32) {
    %c0_i32 = arith.constant 0 : i32
    %c0_i32_0 = arith.constant 0 : i32
    %c0_i32_1 = arith.constant 0 : i32
    return %c0_i32, %c0_i32_0 : i32, i32
  }
  func.func @transform_12(%arg0: i32) -> (i32, i32) {
    %c0_i32 = arith.constant 0 : i32
    %c0_i32_0 = arith.constant 0 : i32
    %c0_i32_1 = arith.constant 0 : i32
    return %c0_i32, %c0_i32_0 : i32, i32
  }
  func.func @transform_13(%arg0: i32) -> (i32, i32) {
    %c0_i32 = arith.constant 0 : i32
    %c0_i32_0 = arith.constant 0 : i32
    %c0_i32_1 = arith.constant 0 : i32
    return %c0_i32, %c0_i32_0 : i32, i32
  }
  func.func @transform_14(%arg0: i32) -> (i32, i32) {
    %c0_i32 = arith.constant 0 : i32
    %c0_i32_0 = arith.constant 0 : i32
    %c0_i32_1 = arith.constant 0 : i32
    return %c0_i32, %c0_i32_0 : i32, i32
  }
  func.func @transform_15(%arg0: i32) -> (i32, i32) {
    %c0_i32 = arith.constant 0 : i32
    %c0_i32_0 = arith.constant 0 : i32
    %c0_i32_1 = arith.constant 0 : i32
    return %c0_i32, %c0_i32_0 : i32, i32
  }
  func.func @transform_16(%arg0: i32) -> (i32, i32) {
    %c0_i32 = arith.constant 0 : i32
    %c0_i32_0 = arith.constant 0 : i32
    return %arg0, %c0_i32 : i32, i32
  }
}

</mosaic_0001>

<llo_original>
// kernel: mlp_forward.1
$region0: #{mlp_forward.1}
  #allocation0 [shape = 'u32[]', space=smem, size = 0x4, offset = 0x4, fixed_abs, tag = 'smem constant byte address 0x4 - core index']
  #allocation1 [shape = 'u32[144,128]{1,0:T(1,128)}', space=vmem, size = 0x12000, scoped, tag = 'internal scratch']
  #allocation2 [shape = 'f32[1,1]{1,0:T(1,128)S(1)}', space=vmem, size = 0x200, scoped, tag = 'scoped memory for mlp_forward.1']
  %s0 = inlined_call_operand.vmem [shape: f32[8,128], index: 0, kind: input, shape index: {}]
  %s1 = inlined_call_operand.vmem [shape: f32[8,1], index: 1, kind: input, shape index: {}]
  %s2 = inlined_call_operand.vmem [shape: f32[8,1], index: 2, kind: input, shape index: {}]
  %s3 = inlined_call_operand.vmem [shape: f32[1,8], index: 3, kind: input, shape index: {}]
  %s4 = inlined_call_operand.vmem [shape: f32[1,128], index: 4, kind: input, shape index: {}]
  %s5 = inlined_call_operand.vmem [shape: f32[1,128], index: 5, kind: input, shape index: {}]
  %s6 = inlined_call_operand.vmem [shape: f32[1,128], index: 6, kind: input, shape index: {}]
  %s7 = inlined_call_operand.vmem [shape: f32[1,128], index: 7, kind: input, shape index: {}]
  %s8 = inlined_call_operand.vmem [shape: f32[1,128], index: 8, kind: input, shape index: {}]
  %s9 = inlined_call_operand.vmem [shape: f32[1,128], index: 9, kind: input, shape index: {}]
  %s10 = inlined_call_operand.vmem [shape: bf16[384,128], index: 10, kind: input, shape index: {}]
  %s11 = inlined_call_operand.vmem [shape: f32[1,128], index: 11, kind: input, shape index: {}]
  %s12 = inlined_call_operand.vmem [shape: bf16[128,64], index: 12, kind: input, shape index: {}]
  %s13 = inlined_call_operand.vmem [shape: f32[1,64], index: 13, kind: input, shape index: {}]
  %s14 = inlined_call_operand.vmem [shape: f32[1,64], index: 14, kind: input, shape index: {}]
  %s15 = inlined_call_operand.<no memory space> [shape: f32[1,1], index: 15, kind: input, shape index: {}]
  %s16 = inlined_call_operand.vmem [shape: f32[8,1], index: 16, kind: output, shape index: {}]
  %s17 = sld [smem:[#allocation0]]
  $region74: #{mlp_forward.1} parent=0
    _
  %s19 = ssub.s32 1, %s17
  %s20 = scalar_select 0, %s19, %s17
  %v21 = vstv %s15
  %22 = vst [vmem:[#allocation2] sm:$0x1] %v21
  // Predicated region
  $region2: #{mlp_forward.1} parent=0 // pred_check
    _
  $region3: #{mlp_forward.1} parent=0 // pred_check_branch
    %24 = sbr.rel (0) target = $region5
  $region4: #{mlp_forward.1} parent=0 // pred_region
    _
  $region5: #{mlp_forward.1} parent=0 // pred_fallthru
    _
  // Predicated region
  $region6: #{mlp_forward.1} parent=0 // pred_check
    _
  $region7: #{mlp_forward.1} parent=0 // pred_check_branch
    %26 = sbr.rel (0) target = $region9
  $region8: #{mlp_forward.1} parent=0 // pred_region
    _
  $region9: #{mlp_forward.1} parent=0 // pred_fallthru
    _
  // Predicated region
  $region10: #{mlp_forward.1} parent=0 // pred_check
    _
  $region11: #{mlp_forward.1} parent=0 // pred_check_branch
    %28 = sbr.rel (0) target = $region13
  $region12: #{mlp_forward.1} parent=0 // pred_region
    _
  $region13: #{mlp_forward.1} parent=0 // pred_fallthru
    _
  // Predicated region
  $region14: #{mlp_forward.1} parent=0 // pred_check
    _
  $region15: #{mlp_forward.1} parent=0 // pred_check_branch
    %30 = sbr.rel (0) target = $region17
  $region16: #{mlp_forward.1} parent=0 // pred_region
    _
  $region17: #{mlp_forward.1} parent=0 // pred_fallthru
    _
  // Predicated region
  $region18: #{mlp_forward.1} parent=0 // pred_check
    _
  $region19: #{mlp_forward.1} parent=0 // pred_check_branch
    %32 = sbr.rel (0) target = $region21
  $region20: #{mlp_forward.1} parent=0 // pred_region
    _
  $region21: #{mlp_forward.1} parent=0 // pred_fallthru
    _
  // Predicated region
  $region22: #{mlp_forward.1} parent=0 // pred_check
    _
  $region23: #{mlp_forward.1} parent=0 // pred_check_branch
    %34 = sbr.rel (0) target = $region25
  $region24: #{mlp_forward.1} parent=0 // pred_region
    _
  $region25: #{mlp_forward.1} parent=0 // pred_fallthru
    _
  // Predicated region
  $region26: #{mlp_forward.1} parent=0 // pred_check
    _
  $region27: #{mlp_forward.1} parent=0 // pred_check_branch
    %36 = sbr.rel (0) target = $region29
  $region28: #{mlp_forward.1} parent=0 // pred_region
    _
  $region29: #{mlp_forward.1} parent=0 // pred_fallthru
    _
  // Predicated region
  $region30: #{mlp_forward.1} parent=0 // pred_check
    _
  $region31: #{mlp_forward.1} parent=0 // pred_check_branch
    %38 = sbr.rel (0) target = $region33
  $region32: #{mlp_forward.1} parent=0 // pred_region
    _
  $region33: #{mlp_forward.1} parent=0 // pred_fallthru
    _
  // Predicated region
  $region34: #{mlp_forward.1} parent=0 // pred_check
    _
  $region35: #{mlp_forward.1} parent=0 // pred_check_branch
    %40 = sbr.rel (0) target = $region37
  $region36: #{mlp_forward.1} parent=0 // pred_region
    _
  $region37: #{mlp_forward.1} parent=0 // pred_fallthru
    _
  // Predicated region
  $region38: #{mlp_forward.1} parent=0 // pred_check
    _
  $region39: #{mlp_forward.1} parent=0 // pred_check_branch
    %42 = sbr.rel (0) target = $region41
  $region40: #{mlp_forward.1} parent=0 // pred_region
    _
  $region41: #{mlp_forward.1} parent=0 // pred_fallthru
    _
  // Predicated region
  $region42: #{mlp_forward.1} parent=0 // pred_check
    _
  $region43: #{mlp_forward.1} parent=0 // pred_check_branch
    %44 = sbr.rel (0) target = $region45
  $region44: #{mlp_forward.1} parent=0 // pred_region
    _
  $region45: #{mlp_forward.1} parent=0 // pred_fallthru
    _
  // Predicated region
  $region46: #{mlp_forward.1} parent=0 // pred_check
    _
  $region47: #{mlp_forward.1} parent=0 // pred_check_branch
    %46 = sbr.rel (0) target = $region49
  $region48: #{mlp_forward.1} parent=0 // pred_region
    _
  $region49: #{mlp_forward.1} parent=0 // pred_fallthru
    _
  // Predicated region
  $region50: #{mlp_forward.1} parent=0 // pred_check
    _
  $region51: #{mlp_forward.1} parent=0 // pred_check_branch
    %48 = sbr.rel (0) target = $region53
  $region52: #{mlp_forward.1} parent=0 // pred_region
    _
  $region53: #{mlp_forward.1} parent=0 // pred_fallthru
    _
  // Predicated region
  $region54: #{mlp_forward.1} parent=0 // pred_check
    _
  $region55: #{mlp_forward.1} parent=0 // pred_check_branch
    %50 = sbr.rel (0) target = $region57
  $region56: #{mlp_forward.1} parent=0 // pred_region
    _
  $region57: #{mlp_forward.1} parent=0 // pred_fallthru
    _
  // Predicated region
  $region58: #{mlp_forward.1} parent=0 // pred_check
    _
  $region59: #{mlp_forward.1} parent=0 // pred_check_branch
    %52 = sbr.rel (0) target = $region61
  $region60: #{mlp_forward.1} parent=0 // pred_region
    _
  $region61: #{mlp_forward.1} parent=0 // pred_fallthru
    _
  // Predicated region
  $region62: #{mlp_forward.1} parent=0 // pred_check
    _
  $region63: #{mlp_forward.1} parent=0 // pred_check_branch
    %54 = sbr.rel (0) target = $region65
  $region64: #{mlp_forward.1} parent=0 // pred_region
    _
  $region65: #{mlp_forward.1} parent=0 // pred_fallthru
    _
  %v56 = vld [vmem:[%s1] sm:$0xff]
  %v57 = vld [vmem:[%s2] sm:$0xff]
  %v58 = vld [vmem:[%s3] sm:$0x1]
  %v59 = vmul.f32 %v56, %v56
  %v61 = vlaneseq
  %v62 = vshrl.u32 %v61, 7
  %v63 = vsub.s32 0, %v62
  %v64 = vrot.slane %v58, %v63
  %v66 = vmul.f32 %v59, %v64
  %67 = vrot.lane.b32.xlu0 %v64, 127
  %v68 = vpop.permute.xlu0 %67
  %v70 = vmul.f32 %v56, %v68
  %v71 = vadd.f32 %v66, %v70
  %72 = vrot.lane.b32.xlu0 %v64, 126
  %v73 = vpop.permute.xlu0 %72
  %v75 = vadd.f32 %v71, %v73
  %v76 = vrsqrt.pop %v75
  %v77 = vmul.f32 %v57, %v57
  %78 = vrot.lane.b32.xlu0 %v64, 125
  %v79 = vpop.permute.xlu0 %78
  %v81 = vmul.f32 %v77, %v79
  %82 = vrot.lane.b32.xlu0 %v64, 124
  %v83 = vpop.permute.xlu0 %82
  %v85 = vmul.f32 %v57, %v83
  %v86 = vadd.f32 %v81, %v85
  %87 = vrot.lane.b32.xlu0 %v64, 123
  %v88 = vpop.permute.xlu0 %87
  %v90 = vadd.f32 %v86, %v88
  %v91 = vrsqrt.pop %v90
  %v92 = vld [vmem:[%s4] sm:$0x1]
  %94 = vset.pattern.permute.xlu0 0
  %95 = vperm.xlu0 %94, %v56
  %v96 = vpop.permute.xlu0 %95
  %v99 = vlaneseq
  %v100 = vshrl.u32 %v99, 7
  %v101 = vsub.s32 0, %v100
  %v102 = vrot.slane %v92, %v101
  %v104 = vmul.f32 %v96, %v102
  %v105 = vld [vmem:[%s5] sm:$0x1]
  %v107 = vlaneseq
  %v108 = vshrl.u32 %v107, 7
  %v109 = vsub.s32 0, %v108
  %v110 = vrot.slane %v105, %v109
  %v112 = vadd.f32 %v104, %v110
  %114 = vset.pattern.permute.xlu0 0
  %115 = vperm.xlu0 %114, %v76
  %v116 = vpop.permute.xlu0 %115
  %v118 = vmul.f32 %v112, %v116
  %v119 = vld [vmem:[%s6] sm:$0x1]
  %v121 = vlaneseq
  %v122 = vshrl.u32 %v121, 7
  %v123 = vsub.s32 0, %v122
  %v124 = vrot.slane %v119, %v123
  %v126 = vadd.f32 %v118, %v124
  %v127 = vmax.f32 %v126, 0.0
  %v128 = vld [vmem:[%s7] sm:$0x1]
  %130 = vset.pattern.permute.xlu0 0
  %131 = vperm.xlu0 %130, %v57
  %v132 = vpop.permute.xlu0 %131
  %v135 = vlaneseq
  %v136 = vshrl.u32 %v135, 7
  %v137 = vsub.s32 0, %v136
  %v138 = vrot.slane %v128, %v137
  %v140 = vmul.f32 %v132, %v138
  %v141 = vld [vmem:[%s8] sm:$0x1]
  %v143 = vlaneseq
  %v144 = vshrl.u32 %v143, 7
  %v145 = vsub.s32 0, %v144
  %v146 = vrot.slane %v141, %v145
  %v148 = vadd.f32 %v140, %v146
  %150 = vset.pattern.permute.xlu0 0
  %151 = vperm.xlu0 %150, %v91
  %v152 = vpop.permute.xlu0 %151
  %v154 = vmul.f32 %v148, %v152
  %v155 = vld [vmem:[%s9] sm:$0x1]
  %v157 = vlaneseq
  %v158 = vshrl.u32 %v157, 7
  %v159 = vsub.s32 0, %v158
  %v160 = vrot.slane %v155, %v159
  %v162 = vadd.f32 %v154, %v160
  %v163 = vmax.f32 %v162, 0.0
  %v164 = vpack.c.bf16 %v127, %v127
  %v165 = vpack.c.bf16 %v163, %v163
  %v166 = vld [vmem:[%s0] sm:$0xff]
  %v167 = vpack.c.bf16 %v166, %v166
  %v168 = vld [vmem:[%s10] sm:$0xf]
  %v169 = vld [vmem:[%s10 + $0x4] sm:$0xf]
  %v170 = vld [vmem:[%s10 + $0x8] sm:$0xf]
  %v171 = vld [vmem:[%s10 + $0xc] sm:$0xf]
  %v172 = vld [vmem:[%s10 + $0x10] sm:$0xf]
  %v173 = vld [vmem:[%s10 + $0x14] sm:$0xf]
  %v174 = vld [vmem:[%s10 + $0x18] sm:$0xf]
  %v175 = vld [vmem:[%s10 + $0x1c] sm:$0xf]
  %v176 = vld [vmem:[%s10 + $0x20] sm:$0xf]
  %v177 = vld [vmem:[%s10 + $0x24] sm:$0xf]
  %v178 = vld [vmem:[%s10 + $0x28] sm:$0xf]
  %v179 = vld [vmem:[%s10 + $0x2c] sm:$0xf]
  %v180 = vld [vmem:[%s10 + $0x30] sm:$0xf]
  %v181 = vld [vmem:[%s10 + $0x34] sm:$0xf]
  %v182 = vld [vmem:[%s10 + $0x38] sm:$0xf]
  %v183 = vld [vmem:[%s10 + $0x3c] sm:$0xf]
  %v184 = vld [vmem:[%s10 + $0x40] sm:$0xf]
  %v185 = vld [vmem:[%s10 + $0x44] sm:$0xf]
  %v186 = vld [vmem:[%s10 + $0x48] sm:$0xf]
  %v187 = vld [vmem:[%s10 + $0x4c] sm:$0xf]
  %v188 = vld [vmem:[%s10 + $0x50] sm:$0xf]
  %v189 = vld [vmem:[%s10 + $0x54] sm:$0xf]
  %v190 = vld [vmem:[%s10 + $0x58] sm:$0xf]
  %v191 = vld [vmem:[%s10 + $0x5c] sm:$0xf]
  %v192 = vld [vmem:[%s10 + $0x60] sm:$0xf]
  %v193 = vld [vmem:[%s10 + $0x64] sm:$0xf]
  %v194 = vld [vmem:[%s10 + $0x68] sm:$0xf]
  %v195 = vld [vmem:[%s10 + $0x6c] sm:$0xf]
  %v196 = vld [vmem:[%s10 + $0x70] sm:$0xf]
  %v197 = vld [vmem:[%s10 + $0x74] sm:$0xf]
  %v198 = vld [vmem:[%s10 + $0x78] sm:$0xf]
  %v199 = vld [vmem:[%s10 + $0x7c] sm:$0xf]
  %v200 = vld [vmem:[%s10 + $0x80] sm:$0xf]
  %v201 = vld [vmem:[%s10 + $0x84] sm:$0xf]
  %v202 = vld [vmem:[%s10 + $0x88] sm:$0xf]
  %v203 = vld [vmem:[%s10 + $0x8c] sm:$0xf]
  %v204 = vld [vmem:[%s10 + $0x90] sm:$0xf]
  %v205 = vld [vmem:[%s10 + $0x94] sm:$0xf]
  %v206 = vld [vmem:[%s10 + $0x98] sm:$0xf]
  %v207 = vld [vmem:[%s10 + $0x9c] sm:$0xf]
  %v208 = vld [vmem:[%s10 + $0xa0] sm:$0xf]
  %v209 = vld [vmem:[%s10 + $0xa4] sm:$0xf]
  %v210 = vld [vmem:[%s10 + $0xa8] sm:$0xf]
  %v211 = vld [vmem:[%s10 + $0xac] sm:$0xf]
  %v212 = vld [vmem:[%s10 + $0xb0] sm:$0xf]
  %v213 = vld [vmem:[%s10 + $0xb4] sm:$0xf]
  %v214 = vld [vmem:[%s10 + $0xb8] sm:$0xf]
  %v215 = vld [vmem:[%s10 + $0xbc] sm:$0xf]
  %v248 = vunpack.c.l.b16 %v184
  %v249 = vunpack.c.l.b16 %v185
  %v250 = vunpack.c.l.b16 %v186
  %v251 = vunpack.c.l.b16 %v187
  %v252 = vunpack.c.l.b16 %v188
  %v253 = vunpack.c.l.b16 %v189
  %v254 = vunpack.c.l.b16 %v190
  %v255 = vunpack.c.l.b16 %v191
  %v256 = vunpack.c.l.b16 %v192
  %v257 = vunpack.c.l.b16 %v193
  %v258 = vunpack.c.l.b16 %v194
  %v259 = vunpack.c.l.b16 %v195
  %v260 = vunpack.c.l.b16 %v196
  %v261 = vunpack.c.l.b16 %v197
  %v262 = vunpack.c.l.b16 %v198
  %v263 = vunpack.c.l.b16 %v199
  %v264 = vunpack.c.l.b16 %v200
  %v265 = vunpack.c.l.b16 %v201
  %v266 = vunpack.c.l.b16 %v202
  %v267 = vunpack.c.l.b16 %v203
  %v268 = vunpack.c.l.b16 %v204
  %v269 = vunpack.c.l.b16 %v205
  %v270 = vunpack.c.l.b16 %v206
  %v271 = vunpack.c.l.b16 %v207
  %v272 = vunpack.c.l.b16 %v208
  %v273 = vunpack.c.l.b16 %v209
  %v274 = vunpack.c.l.b16 %v210
  %v275 = vunpack.c.l.b16 %v211
  %v276 = vunpack.c.l.b16 %v212
  %v277 = vunpack.c.l.b16 %v213
  %v278 = vunpack.c.l.b16 %v214
  %v279 = vunpack.c.l.b16 %v215
  %v280 = vpack.c.b16 %v249, %v248
  %v281 = vpack.c.b16 %v251, %v250
  %v282 = vpack.c.b16 %v253, %v252
  %v283 = vpack.c.b16 %v255, %v254
  %v284 = vpack.c.b16 %v257, %v256
  %v285 = vpack.c.b16 %v259, %v258
  %v286 = vpack.c.b16 %v261, %v260
  %v287 = vpack.c.b16 %v263, %v262
  %v288 = vpack.c.b16 %v265, %v264
  %v289 = vpack.c.b16 %v267, %v266
  %v290 = vpack.c.b16 %v269, %v268
  %v291 = vpack.c.b16 %v271, %v270
  %v292 = vpack.c.b16 %v273, %v272
  %v293 = vpack.c.b16 %v275, %v274
  %v294 = vpack.c.b16 %v277, %v276
  %v295 = vpack.c.b16 %v279, %v278
  %312 = vmatprep.subr.bf16.mxu0 0
  %313 = vmatpush1.bf16.msra.mxu0 %v280
  %314 = vmatprep.subr.bf16.mxu0 0
  %315 = vmatpush1.bf16.msra.mxu0 %v281
  %316 = vmatprep.subr.bf16.mxu0 0
  %317 = vmatpush1.bf16.msra.mxu0 %v282
  %318 = vmatprep.subr.bf16.mxu0 0
  %319 = vmatpush1.bf16.msra.mxu0 %v283
  %320 = vmatprep.subr.bf16.mxu0 0
  %321 = vmatpush1.bf16.msra.mxu0 %v284
  %322 = vmatprep.subr.bf16.mxu0 0
  %323 = vmatpush1.bf16.msra.mxu0 %v285
  %324 = vmatprep.subr.bf16.mxu0 0
  %325 = vmatpush1.bf16.msra.mxu0 %v286
  %326 = vmatprep.subr.bf16.mxu0 0
  %327 = vmatpush1.bf16.msra.mxu0 %v287
  %328 = vmatprep.subr.bf16.mxu0 0
  %329 = vmatpush1.bf16.msra.mxu0 %v288
  %330 = vmatprep.subr.bf16.mxu0 0
  %331 = vmatpush1.bf16.msra.mxu0 %v289
  %332 = vmatprep.subr.bf16.mxu0 0
  %333 = vmatpush1.bf16.msra.mxu0 %v290
  %334 = vmatprep.subr.bf16.mxu0 0
  %335 = vmatpush1.bf16.msra.mxu0 %v291
  %336 = vmatprep.subr.bf16.mxu0 0
  %337 = vmatpush1.bf16.msra.mxu0 %v292
  %338 = vmatprep.subr.bf16.mxu0 0
  %339 = vmatpush1.bf16.msra.mxu0 %v293
  %340 = vmatprep.subr.bf16.mxu0 0
  %341 = vmatpush1.bf16.msra.mxu0 %v294
  %342 = vmatprep.subr.bf16.mxu0 0
  %343 = vmatpush1.bf16.msra.mxu0 %v295
  %344 = vmatprep.mubr.bf16.mxu0 %v165
  %345 = vmatmul.mubr.bf16.gmra.mrb[0].mxu0 %v164
  %v346 = vpop.f32.mrb[0].mxu0
  %v347 = vadd.f32 0.0, %v346
  %v348 = vpop.f32.mrb[0].mxu0
  %v349 = vpop.f32.mrb[0].mxu0
  %v350 = vpop.f32.mrb[0].mxu0
  %351 = vdwg.mxu0
  %v368 = vunpack.c.l.b16 %v168
  %v369 = vunpack.c.l.b16 %v169
  %v370 = vunpack.c.l.b16 %v170
  %v371 = vunpack.c.l.b16 %v171
  %v372 = vunpack.c.l.b16 %v172
  %v373 = vunpack.c.l.b16 %v173
  %v374 = vunpack.c.l.b16 %v174
  %v375 = vunpack.c.l.b16 %v175
  %v376 = vunpack.c.l.b16 %v176
  %v377 = vunpack.c.l.b16 %v177
  %v378 = vunpack.c.l.b16 %v178
  %v379 = vunpack.c.l.b16 %v179
  %v380 = vunpack.c.l.b16 %v180
  %v381 = vunpack.c.l.b16 %v181
  %v382 = vunpack.c.l.b16 %v182
  %v383 = vunpack.c.l.b16 %v183
  %v384 = vpack.c.b16 %v369, %v368
  %v385 = vpack.c.b16 %v371, %v370
  %v386 = vpack.c.b16 %v373, %v372
  %v387 = vpack.c.b16 %v375, %v374
  %v388 = vpack.c.b16 %v377, %v376
  %v389 = vpack.c.b16 %v379, %v378
  %v390 = vpack.c.b16 %v381, %v380
  %v391 = vpack.c.b16 %v383, %v382
  %400 = vmatprep.subr.bf16.mxu0 0
  %401 = vmatpush1.bf16.msra.mxu0 %v384
  %402 = vmatprep.subr.bf16.mxu0 0
  %403 = vmatpush1.bf16.msra.mxu0 %v385
  %404 = vmatprep.subr.bf16.mxu0 0
  %405 = vmatpush1.bf16.msra.mxu0 %v386
  %406 = vmatprep.subr.bf16.mxu0 0
  %407 = vmatpush1.bf16.msra.mxu0 %v387
  %408 = vmatprep.subr.bf16.mxu0 0
  %409 = vmatpush1.bf16.msra.mxu0 %v388
  %410 = vmatprep.subr.bf16.mxu0 0
  %411 = vmatpush1.bf16.msra.mxu0 %v389
  %412 = vmatprep.subr.bf16.mxu0 0
  %413 = vmatpush1.bf16.msra.mxu0 %v390
  %414 = vmatprep.subr.bf16.mxu0 0
  %415 = vmatpush1.bf16.msra.mxu0 %v391
  %416 = vmatprep.subr.bf16.mxu0 0
  %417 = vmatpush1.bf16.msra.mxu0 0
  %418 = vmatprep.subr.bf16.mxu0 0
  %419 = vmatpush1.bf16.msra.mxu0 0
  %420 = vmatprep.subr.bf16.mxu0 0
  %421 = vmatpush1.bf16.msra.mxu0 0
  %422 = vmatprep.subr.bf16.mxu0 0
  %423 = vmatpush1.bf16.msra.mxu0 0
  %424 = vmatprep.subr.bf16.mxu0 0
  %425 = vmatpush1.bf16.msra.mxu0 0
  %426 = vmatprep.subr.bf16.mxu0 0
  %427 = vmatpush1.bf16.msra.mxu0 0
  %428 = vmatprep.subr.bf16.mxu0 0
  %429 = vmatpush1.bf16.msra.mxu0 0
  %430 = vmatprep.subr.bf16.mxu0 0
  %431 = vmatpush1.bf16.msra.mxu0 0
  %432 = vmatprep.mubr.bf16.mxu0 0
  %433 = vmatmul.mubr.bf16.gmra.mrb[0].mxu0 %v167
  %v434 = vpop.f32.mrb[0].mxu0
  %v435 = vadd.f32 %v347, %v434
  %v436 = vpop.f32.mrb[0].mxu0
  %v437 = vpop.f32.mrb[0].mxu0
  %v438 = vpop.f32.mrb[0].mxu0
  %439 = vdwg.mxu0
  %v440 = vld [vmem:[%s11] sm:$0x1]
  %v442 = vlaneseq
  %v443 = vshrl.u32 %v442, 7
  %v444 = vsub.s32 0, %v443
  %v445 = vrot.slane %v440, %v444
  %v447 = vadd.f32 %v435, %v445
  %v448 = vmax.f32 %v447, 0.0
  %v449 = vpack.c.bf16 %v448, %v448
  %v450 = vld [vmem:[%s12] sm:$0xf]
  %v451 = vld [vmem:[%s12 + $0x4] sm:$0xf]
  %v452 = vld [vmem:[%s12 + $0x8] sm:$0xf]
  %v453 = vld [vmem:[%s12 + $0xc] sm:$0xf]
  %v454 = vld [vmem:[%s12 + $0x10] sm:$0xf]
  %v455 = vld [vmem:[%s12 + $0x14] sm:$0xf]
  %v456 = vld [vmem:[%s12 + $0x18] sm:$0xf]
  %v457 = vld [vmem:[%s12 + $0x1c] sm:$0xf]
  %v458 = vld [vmem:[%s12 + $0x20] sm:$0xf]
  %v459 = vld [vmem:[%s12 + $0x24] sm:$0xf]
  %v460 = vld [vmem:[%s12 + $0x28] sm:$0xf]
  %v461 = vld [vmem:[%s12 + $0x2c] sm:$0xf]
  %v462 = vld [vmem:[%s12 + $0x30] sm:$0xf]
  %v463 = vld [vmem:[%s12 + $0x34] sm:$0xf]
  %v464 = vld [vmem:[%s12 + $0x38] sm:$0xf]
  %v465 = vld [vmem:[%s12 + $0x3c] sm:$0xf]
  %v466 = vld [vmem:[%s13] sm:$0x1]
  %v468 = vlaneseq
  %v469 = vshrl.u32 %v468, 7
  %v470 = vsub.s32 0, %v469
  %v471 = vrot.slane %v466, %v470
  %v489 = vunpack.c.l.b16 %v450
  %v490 = vunpack.c.l.b16 %v451
  %v491 = vunpack.c.l.b16 %v452
  %v492 = vunpack.c.l.b16 %v453
  %v493 = vunpack.c.l.b16 %v454
  %v494 = vunpack.c.l.b16 %v455
  %v495 = vunpack.c.l.b16 %v456
  %v496 = vunpack.c.l.b16 %v457
  %v497 = vunpack.c.l.b16 %v458
  %v498 = vunpack.c.l.b16 %v459
  %v499 = vunpack.c.l.b16 %v460
  %v500 = vunpack.c.l.b16 %v461
  %v501 = vunpack.c.l.b16 %v462
  %v502 = vunpack.c.l.b16 %v463
  %v503 = vunpack.c.l.b16 %v464
  %v504 = vunpack.c.l.b16 %v465
  %v505 = vpack.c.b16 %v490, %v489
  %v506 = vpack.c.b16 %v492, %v491
  %v507 = vpack.c.b16 %v494, %v493
  %v508 = vpack.c.b16 %v496, %v495
  %v509 = vpack.c.b16 %v498, %v497
  %v510 = vpack.c.b16 %v500, %v499
  %v511 = vpack.c.b16 %v502, %v501
  %v512 = vpack.c.b16 %v504, %v503
  %521 = vmatprep.subr.bf16.mxu0 0
  %522 = vmatpush1.bf16.msra.mxu0 %v505
  %523 = vmatprep.subr.bf16.mxu0 0
  %524 = vmatpush1.bf16.msra.mxu0 %v506
  %525 = vmatprep.subr.bf16.mxu0 0
  %526 = vmatpush1.bf16.msra.mxu0 %v507
  %527 = vmatprep.subr.bf16.mxu0 0
  %528 = vmatpush1.bf16.msra.mxu0 %v508
  %529 = vmatprep.subr.bf16.mxu0 0
  %530 = vmatpush1.bf16.msra.mxu0 %v509
  %531 = vmatprep.subr.bf16.mxu0 0
  %532 = vmatpush1.bf16.msra.mxu0 %v510
  %533 = vmatprep.subr.bf16.mxu0 0
  %534 = vmatpush1.bf16.msra.mxu0 %v511
  %535 = vmatprep.subr.bf16.mxu0 0
  %536 = vmatpush1.bf16.msra.mxu0 %v512
  %537 = vmatprep.subr.bf16.mxu0 0
  %538 = vmatpush1.bf16.msra.mxu0 0
  %539 = vmatprep.subr.bf16.mxu0 0
  %540 = vmatpush1.bf16.msra.mxu0 0
  %541 = vmatprep.subr.bf16.mxu0 0
  %542 = vmatpush1.bf16.msra.mxu0 0
  %543 = vmatprep.subr.bf16.mxu0 0
  %544 = vmatpush1.bf16.msra.mxu0 0
  %545 = vmatprep.subr.bf16.mxu0 0
  %546 = vmatpush1.bf16.msra.mxu0 0
  %547 = vmatprep.subr.bf16.mxu0 0
  %548 = vmatpush1.bf16.msra.mxu0 0
  %549 = vmatprep.subr.bf16.mxu0 0
  %550 = vmatpush1.bf16.msra.mxu0 0
  %551 = vmatprep.subr.bf16.mxu0 0
  %552 = vmatpush1.bf16.msra.mxu0 0
  %553 = vmatprep.mubr.bf16.mxu0 0
  %554 = vmatmul.mubr.bf16.gmra.mrb[0].mxu0 %v449
  %v555 = vpop.f32.mrb[0].mxu0
  %v556 = vadd.f32 %v471, %v555
  %v557 = vpop.f32.mrb[0].mxu0
  %v558 = vpop.f32.mrb[0].mxu0
  %v559 = vpop.f32.mrb[0].mxu0
  %560 = vdwg.mxu0
  %v561 = vmax.f32 %v556, 0.0
  %v562 = vld [vmem:[%s14] sm:$0x1]
  %v564 = vlaneseq
  %v565 = vshrl.u32 %v564, 7
  %v566 = vsub.s32 0, %v565
  %v567 = vrot.slane %v562, %v566
  %v569 = vmul.f32 %v561, %v567
  %vm570 = vcmask 523264
  %v571 = vsel %vm570, %v569, 0.0
  %572 = vadd.xlane.f32.xlu0 %v571
  %v573 = vpop.xlane.xlu0 %572
  %v574 = vld [vmem:[#allocation2] sm:$0x1]
  %v576 = vlaneseq
  %v577 = vshrl.u32 %v576, 7
  %v578 = vsub.s32 0, %v577
  %v579 = vrot.slane %v574, %v578
  %v581 = vadd.f32 %v573, %v579
  %vm582 = vcmask 7168
  %583 = vst.msk [vmem:[%s16] sm:$0xff] %vm582, %v581
  // Predicated region
  $region66: #{mlp_forward.1} parent=0 // pred_check
    _
  $region67: #{mlp_forward.1} parent=0 // pred_check_branch
    %585 = sbr.rel (0) target = $region69
  $region68: #{mlp_forward.1} parent=0 // pred_region
    _
  $region69: #{mlp_forward.1} parent=0 // pred_fallthru
    _
  // Predicated region
  $region70: #{mlp_forward.1} parent=0 // pred_check
    _
  $region71: #{mlp_forward.1} parent=0 // pred_check_branch
    %587 = sbr.rel (0) target = $region73
  $region72: #{mlp_forward.1} parent=0 // pred_region
    _
  $region73: #{mlp_forward.1} parent=0 // pred_fallthru
    _

</llo_original>
